<compile_context>
chip_gen: v7x
topology: tpu7x:2x2x1
jax: 0.10.0
libtpu: 0.0.40
codegen_flags: <defaults>
</compile_context>

<pallas_src>
from functools import partial

import numpy as np
import jax
import jax.numpy as jnp
from jax.experimental import pallas as pl
from jax.experimental.pallas import tpu as pltpu


_F = 8            # feature rows: xyz(3) + rgb(3) + count(1) + pad(1)
_CNT = 6          # index of the count row
_TN_MAX = 2048    # points per N tile (amortizes ~0.35us/step and DMA count)
_TV_MAX = 256     # voxels per V tile (fine dead-tile skip granularity)


def _round_up(x: int, m: int) -> int:
    return ((x + m - 1) // m) * m


# ----------------------------- Pallas kernel --------------------------------

def _voxel_average_kernel(vblk_ref, nocc_ref, ids_ref, feats_ref, out_ref, acc_ref):
    """One (V-tile, N-tile) grid step of the segmented per-voxel average.

    vblk_ref : SMEM (n_vt,)  int32   program-id -> voxel-tile index (megacore interleave)
    nocc_ref : SMEM (1,)     int32   number of occupied voxel slots
    ids_ref  : VMEM (1, TN)  int32   voxel id per point (lane-dense)
    feats_ref: VMEM (8, TN)  float32 point features, transposed (ones row at _CNT)
    out_ref  : VMEM (8, TV)  float32 per-voxel [mean(0:6) rows, count row, pad row]
    acc_ref  : VMEM (8, TV)  float32 running sums across N tiles
    """
    j = pl.program_id(0)                       # V tile (parallel)
    k = pl.program_id(1)                       # N tile (reduction, last axis)
    tv = out_ref.shape[1]
    tn = ids_ref.shape[1]
    vbase = vblk_ref[j] * tv                   # voxel base of this (interleaved) tile

    @pl.when(k == 0)
    def _init():
        acc_ref[...] = jnp.zeros_like(acc_ref)

    # Skip the one-hot + matmul entirely for voxel tiles past the occupied range.
    @pl.when(vbase < nocc_ref[0])
    def _accumulate():
        rel = ids_ref[...] - vbase                                     # (1, TN), cheap
        v_iota = jax.lax.broadcasted_iota(jnp.int32, (tv, tn), 0)      # loop-invariant
        onehot_t = (v_iota == rel).astype(jnp.float32)                 # (TV, TN)
        # Segmented sum on the MXU; the ones row folds the count in for free.
        acc_ref[...] += jax.lax.dot_general(
            feats_ref[...], onehot_t, (((1,), (1,)), ((), ())),
            preferred_element_type=jnp.float32)                        # (8, TV)

    @pl.when(k == pl.num_programs(1) - 1)
    def _finalize():
        sums = acc_ref[...]                                            # (8, TV)
        cnt = sums[_CNT:_CNT + 1, :]                                   # (1, TV)
        cnt_c = jnp.maximum(cnt, 1.0)
        inv = pl.reciprocal(cnt_c, approx=True)                        # EUP slot
        inv = inv * (2.0 - cnt_c * inv)                                # Newton step -> f32 accurate
        row = jax.lax.broadcasted_iota(jnp.int32, sums.shape, 0)
        # rows 0..5: mean; row 6: raw count; row 7: zero padding.
        out_ref[...] = jnp.where(row < _CNT, sums * inv, sums)


def voxel_average_pallas(vblk, n_occ, ids_row, feats_t, v_pad, *, tn, tv):
    """Per-voxel (8, V_pad) [mean rows, count row] from lane-dense ids + transposed feats."""
    n_pad = ids_row.shape[1]
    grid = (v_pad // tv, n_pad // tn)

    def ids_map(j, k, vblk_ref, nocc_ref):
        live = vblk_ref[j] * tv < nocc_ref[0]
        return (0, jnp.where(live, k, 0))            # freeze block -> pipeliner skips DMA

    def feats_map(j, k, vblk_ref, nocc_ref):
        live = vblk_ref[j] * tv < nocc_ref[0]
        return (0, jnp.where(live, k, 0))

    def out_map(j, k, vblk_ref, nocc_ref):
        return (0, vblk_ref[j])

    return pl.pallas_call(
        _voxel_average_kernel,
        out_shape=jax.ShapeDtypeStruct((_F, v_pad), jnp.float32),
        grid_spec=pltpu.PrefetchScalarGridSpec(
            num_scalar_prefetch=2,
            grid=grid,
            in_specs=[
                pl.BlockSpec((1, tn), ids_map),
                pl.BlockSpec((_F, tn), feats_map),
            ],
            out_specs=pl.BlockSpec((_F, tv), out_map),
            scratch_shapes=[pltpu.VMEM((_F, tv), jnp.float32)],
        ),
        compiler_params=pltpu.CompilerParams(
            dimension_semantics=("parallel", "arbitrary"),
            vmem_limit_bytes=32 * 1024 * 1024),      # budget is <3 MiB; 32 MiB safe on all gens
    )(vblk, n_occ, ids_row, feats_t)


# ------------------------------ JAX glue -------------------------------------

@partial(jax.jit, static_argnames=("voxel_size",))
def _voxel_filter_core(coords, colors, voxel_size):
    """Jittable core: returns (out_t, n_occ) with out_t (8, V_pad) padded per-voxel stats."""
    n = coords.shape[0]
    coords = coords.astype(jnp.float32)
    colors = colors.astype(jnp.float32)

    # --- key compaction (data-dependent glue, plain JAX) ---
    vox = jnp.floor(coords / voxel_size).astype(jnp.int32)            # (N, 3)
    vmin = vox.min(axis=0)
    shifted = vox - vmin
    dims = shifted.max(axis=0) + 1
    keys = (shifted[:, 0] * dims[1] + shifted[:, 1]) * dims[2] + shifted[:, 2]
    fill = jnp.int32(2 ** 31 - 1)
    uniq, inv = jnp.unique(keys, size=n, fill_value=fill, return_inverse=True)
    n_occ = jnp.sum(uniq != fill).astype(jnp.int32)                   # occupied voxel slots

    # --- lane-dense packing / padding for the kernel ---
    tn = min(_TN_MAX, _round_up(n, 128))
    tv = min(_TV_MAX, _round_up(n, 128))
    n_pad = _round_up(n, tn)
    v_pad = _round_up(n, tv)                                          # ids live in [0, n)
    n_vt = v_pad // tv

    ids_row = jnp.full((1, n_pad), v_pad, dtype=jnp.int32)            # sentinel never matches
    ids_row = ids_row.at[0, :n].set(inv.astype(jnp.int32).reshape(-1))

    feats_t = jnp.zeros((_F, n_pad), dtype=jnp.float32)               # transposed: lane-dense
    feats_t = feats_t.at[0:3, :n].set(coords.T)
    feats_t = feats_t.at[3:6, :n].set(colors.T)
    feats_t = feats_t.at[_CNT, :n].set(1.0)                           # ones row -> counts

    # Megacore (v7x) load balance: interleave voxel tiles across the two halves of the
    # "parallel" grid axis so live (low-index) tiles are split between both TensorCores.
    if n_vt % 2 == 0 and n_vt >= 4:
        half = n_vt // 2
        j_idx = np.arange(n_vt)
        vblk_np = np.where(j_idx < half, 2 * j_idx, 2 * (j_idx - half) + 1)
    else:
        vblk_np = np.arange(n_vt)
    vblk = jnp.asarray(vblk_np, dtype=jnp.int32)

    out_t = voxel_average_pallas(vblk, n_occ.reshape(1), ids_row, feats_t,
                                 v_pad, tn=tn, tv=tv)
    return out_t, n_occ


def voxel_filter(coords, colors, voxel_size):
    """Voxel-grid downsampling with 'average' coordinate/color reduction.

    coords: (N, 3) float32, colors: (N, 3) float32.
    Returns (ds_coords, ds_colors) with one row per occupied voxel.
    """
    out_t, n_occ = _voxel_filter_core(coords, colors, float(voxel_size))
    # Dynamic-size result (one row per occupied voxel) requires a host readback at this
    # non-jitted boundary.  Callers that can use a padded result should consume
    # (_voxel_filter_core outputs) directly and skip this sync.
    n_valid = int(n_occ)
    occ = out_t[:, :n_valid]                                          # (8, n_valid)
    return occ[0:3, :].T, occ[3:6, :].T


class Downsample:
    """JAX/Pallas port of edf.preprocess.Downsample.

    Only the PointCloud branch carries compute; None passes through, SE3 is
    identity, and DemoSequence/TargetPoseDemo are just recursive containers.
    """

    def __init__(self, voxel_size: float, coord_reduction: str = "average"):
        # TODO(synk): coord_reduction='center' (snap to voxel centers) not implemented.
        assert coord_reduction == "average"
        self.voxel_size = float(voxel_size)
        self.coord_reduction = coord_reduction

    def __call__(self, data):
        if data is None:
            return None
        # PointCloud represented as a (coords, colors) tuple of (N, 3) arrays.
        coords, colors = data
        return voxel_filter(coords, colors, self.voxel_size)


# ------------------------------- main ----------------------------------------

if __name__ == "__main__":
    key = jax.random.PRNGKey(0)
    kc, kr = jax.random.split(key)
    N = 64
    coords = jax.random.uniform(kc, (N, 3), minval=0.0, maxval=2.0, dtype=jnp.float32)
    colors = jax.random.uniform(kr, (N, 3), dtype=jnp.float32)

    module = Downsample(voxel_size=0.5, coord_reduction="average")
    ds_coords, ds_colors = module((coords, colors))
    jax.block_until_ready((ds_coords, ds_colors))

    # --- reference check against pure-JAX segment mean ---
    vox = jnp.floor(coords / 0.5).astype(jnp.int32)
    vmin = vox.min(axis=0)
    shifted = vox - vmin
    dims = shifted.max(axis=0) + 1
    keys = (shifted[:, 0] * dims[1] + shifted[:, 1]) * dims[2] + shifted[:, 2]
    fill = jnp.int32(2 ** 31 - 1)
    uniq, inv = jnp.unique(keys, size=N, fill_value=fill, return_inverse=True)
    feats = jnp.concatenate([coords, colors], axis=-1)
    seg_sum = jax.ops.segment_sum(feats, inv, num_segments=N)
    seg_cnt = jax.ops.segment_sum(jnp.ones((N, 1), jnp.float32), inv, num_segments=N)
    ref_mean = seg_sum / jnp.maximum(seg_cnt, 1.0)

    n_valid = ds_coords.shape[0]
    assert n_valid == int(jnp.sum(uniq != fill)), "occupied-voxel count mismatch"
    np.testing.assert_allclose(np.asarray(ds_coords),
                               np.asarray(ref_mean[:n_valid, :3]),
                               rtol=1e-4, atol=1e-5)
    np.testing.assert_allclose(np.asarray(ds_colors),
                               np.asarray(ref_mean[:n_valid, 3:]),
                               rtol=1e-4, atol=1e-5)

    print("KERNEL_OK")
</pallas_src>

<mosaic_0001>
module attributes {stable_mosaic.version = 11 : i64} {
  func.func private @main(%arg0: i32) attributes {dimension_semantics = [#tpu.dimension_semantics<core_parallel>], iteration_bounds = array<i64: 2>, tpu.core_type = #tpu.core_type<sc_scalar_subcore>, window_params = []} {
    return
  }
}

module attributes {stable_mosaic.version = 11 : i64} {
  func.func private @main(%arg0: i32) attributes {dimension_semantics = [#tpu.dimension_semantics<core_parallel>], iteration_bounds = array<i64: 2>, tpu.core_type = #tpu.core_type<sc_scalar_subcore>, window_params = []} {
    return
  }
}

module attributes {stable_mosaic.version = 11 : i64} {
  func.func @_voxel_average_kernel(%arg0: i32, %arg1: i32, %arg2: memref<1xi32, #tpu.memory_space<smem>>, %arg3: memref<1xi32, #tpu.memory_space<smem>>, %arg4: memref<1x128xi32, #tpu.memory_space<vmem>>, %arg5: memref<8x128xf32, #tpu.memory_space<vmem>>, %arg6: memref<8x128xf32, #tpu.memory_space<vmem>>, %arg7: memref<8x128xf32, #tpu.memory_space<vmem>>) attributes {dimension_semantics = [#tpu.dimension_semantics<parallel>, #tpu.dimension_semantics<arbitrary>], iteration_bounds = array<i64: 1, 1>, scalar_prefetch = 2 : i64, scratch_operands = 1 : i64, tpu.core_type = #tpu.core_type<tc>, window_params = [{transform_indices = @transform_0, window_bounds = array<i64: 1, 128>}, {transform_indices = @transform_1, window_bounds = array<i64: 8, 128>}, {transform_indices = @transform_2, window_bounds = array<i64: 8, 128>}]} {
    %0 = arith.index_cast %arg0 : i32 to index
    %1 = memref.load %arg2[%0] : memref<1xi32, #tpu.memory_space<smem>>
    %c128_i32 = arith.constant 128 : i32
    %2 = arith.muli %1, %c128_i32 : i32
    %c0_i32 = arith.constant 0 : i32
    %3 = arith.cmpi eq, %arg1, %c0_i32 : i32
    %4 = arith.extui %3 : i1 to i32
    %c0_i32_0 = arith.constant 0 : i32
    %5 = arith.cmpi ne, %4, %c0_i32_0 : i32
    scf.if %5 {
      %cst = arith.constant 0.000000e+00 : f32
      %13 = vector.broadcast %cst : f32 to vector<8x128xf32>
      %c0_4 = arith.constant 0 : index
      %c0_5 = arith.constant 0 : index
      %14 = vector.load %arg7[%c0_4, %c0_5] : memref<8x128xf32, #tpu.memory_space<vmem>>, vector<8x128xf32>
      tpu.vector_store %arg7[%c0_4, %c0_5], %13 {strides = array<i32>} : memref<8x128xf32, #tpu.memory_space<vmem>>, vector<8x128xf32>,
    } else {
    }
    %c0 = arith.constant 0 : index
    %6 = memref.load %arg3[%c0] : memref<1xi32, #tpu.memory_space<smem>>
    %7 = arith.cmpi slt, %2, %6 : i32
    %8 = arith.extui %7 : i1 to i32
    %c0_i32_1 = arith.constant 0 : i32
    %9 = arith.cmpi ne, %8, %c0_i32_1 : i32
    scf.if %9 {
      %c0_4 = arith.constant 0 : index
      %c0_5 = arith.constant 0 : index
      %13 = vector.load %arg4[%c0_4, %c0_5] : memref<1x128xi32, #tpu.memory_space<vmem>>, vector<1x128xi32>
      %14 = vector.broadcast %2 : i32 to vector<1x128xi32>
      %15 = arith.subi %13, %14 : vector<1x128xi32>
      %16 = tpu.iota {dimensions = array<i32: 0>} : vector<128x128xi32>
      %17 = vector.broadcast %15 : vector<1x128xi32> to vector<128x128xi32>
      %18 = arith.cmpi eq, %16, %17 : vector<128x128xi32>
      %19 = arith.extui %18 : vector<128x128xi1> to vector<128x128xi32>
      %20 = arith.sitofp %19 : vector<128x128xi32> to vector<128x128xf32>
      %c0_6 = arith.constant 0 : index
      %c0_7 = arith.constant 0 : index
      %21 = vector.load %arg7[%c0_6, %c0_7] : memref<8x128xf32, #tpu.memory_space<vmem>>, vector<8x128xf32>
      %c0_8 = arith.constant 0 : index
      %c0_9 = arith.constant 0 : index
      %22 = vector.load %arg5[%c0_8, %c0_9] : memref<8x128xf32, #tpu.memory_space<vmem>>, vector<8x128xf32>
      %cst = arith.constant dense<0.000000e+00> : vector<8x128xf32>
      %23 = tpu.matmul %22, %20, %cst {dimension_numbers = #tpu.dot_dimension_numbers<[1], [1], [0], [0], [0, 0, 1, 0], [], []>} : vector<8x128xf32>, vector<128x128xf32>, vector<8x128xf32> -> vector<8x128xf32>
      %24 = arith.addf %21, %23 : vector<8x128xf32>
      %c0_10 = arith.constant 0 : index
      %c0_11 = arith.constant 0 : index
      %25 = vector.load %arg7[%c0_10, %c0_11] : memref<8x128xf32, #tpu.memory_space<vmem>>, vector<8x128xf32>
      tpu.vector_store %arg7[%c0_10, %c0_11], %24 {strides = array<i32>} : memref<8x128xf32, #tpu.memory_space<vmem>>, vector<8x128xf32>,
    } else {
    }
    %c0_i32_2 = arith.constant 0 : i32
    %10 = arith.cmpi eq, %arg1, %c0_i32_2 : i32
    %11 = arith.extui %10 : i1 to i32
    %c0_i32_3 = arith.constant 0 : i32
    %12 = arith.cmpi ne, %11, %c0_i32_3 : i32
    scf.if %12 {
      %c0_4 = arith.constant 0 : index
      %c0_5 = arith.constant 0 : index
      %13 = vector.load %arg7[%c0_4, %c0_5] : memref<8x128xf32, #tpu.memory_space<vmem>>, vector<8x128xf32>
      %14 = vector.extract_strided_slice %13 {offsets = [6, 0], sizes = [1, 128], strides = [1, 1]} : vector<8x128xf32> to vector<1x128xf32>
      %cst = arith.constant 1.000000e+00 : f32
      %15 = vector.broadcast %cst : f32 to vector<1x128xf32>
      %16 = arith.maximumf %14, %15 : vector<1x128xf32>
      %17 = tpu.reciprocal %16 {approx = true} : vector<1x128xf32> -> vector<1x128xf32>
      %18 = arith.mulf %16, %17 : vector<1x128xf32>
      %cst_6 = arith.constant 2.000000e+00 : f32
      %19 = vector.broadcast %cst_6 : f32 to vector<1x128xf32>
      %20 = arith.subf %19, %18 : vector<1x128xf32>
      %21 = arith.mulf %17, %20 : vector<1x128xf32>
      %22 = tpu.iota {dimensions = array<i32: 0>} : vector<8x128xi32>
      %c6_i32 = arith.constant 6 : i32
      %23 = vector.broadcast %c6_i32 : i32 to vector<8x128xi32>
      %24 = arith.cmpi slt, %22, %23 : vector<8x128xi32>
      %25 = vector.broadcast %21 : vector<1x128xf32> to vector<8x128xf32>
      %26 = arith.mulf %13, %25 : vector<8x128xf32>
      %27 = arith.select %24, %26, %13 : vector<8x128xi1>, vector<8x128xf32>
      %c0_7 = arith.constant 0 : index
      %c0_8 = arith.constant 0 : index
      %28 = vector.load %arg6[%c0_7, %c0_8] : memref<8x128xf32, #tpu.memory_space<vmem>>, vector<8x128xf32>
      tpu.vector_store %arg6[%c0_7, %c0_8], %27 {strides = array<i32>} : memref<8x128xf32, #tpu.memory_space<vmem>>, vector<8x128xf32>,
    } else {
    }
    return
  }
  func.func @transform_0(%arg0: i32, %arg1: i32, %arg2: memref<1xi32, #tpu.memory_space<smem>>, %arg3: memref<1xi32, #tpu.memory_space<smem>>) -> (i32, i32) {
    %0 = arith.index_cast %arg0 : i32 to index
    %1 = memref.load %arg2[%0] : memref<1xi32, #tpu.memory_space<smem>>
    %c128_i32 = arith.constant 128 : i32
    %2 = arith.muli %1, %c128_i32 : i32
    %c0 = arith.constant 0 : index
    %3 = memref.load %arg3[%c0] : memref<1xi32, #tpu.memory_space<smem>>
    %4 = arith.cmpi slt, %2, %3 : i32
    %c0_i32 = arith.constant 0 : i32
    %5 = arith.select %4, %arg1, %c0_i32 : i32
    %c0_i32_0 = arith.constant 0 : i32
    %c0_i32_1 = arith.constant 0 : i32
    return %c0_i32_0, %5 : i32, i32
  }
  func.func @transform_1(%arg0: i32, %arg1: i32, %arg2: memref<1xi32, #tpu.memory_space<smem>>, %arg3: memref<1xi32, #tpu.memory_space<smem>>) -> (i32, i32) {
    %0 = arith.index_cast %arg0 : i32 to index
    %1 = memref.load %arg2[%0] : memref<1xi32, #tpu.memory_space<smem>>
    %c128_i32 = arith.constant 128 : i32
    %2 = arith.muli %1, %c128_i32 : i32
    %c0 = arith.constant 0 : index
    %3 = memref.load %arg3[%c0] : memref<1xi32, #tpu.memory_space<smem>>
    %4 = arith.cmpi slt, %2, %3 : i32
    %c0_i32 = arith.constant 0 : i32
    %5 = arith.select %4, %arg1, %c0_i32 : i32
    %c0_i32_0 = arith.constant 0 : i32
    %c0_i32_1 = arith.constant 0 : i32
    return %c0_i32_0, %5 : i32, i32
  }
  func.func @transform_2(%arg0: i32, %arg1: i32, %arg2: memref<1xi32, #tpu.memory_space<smem>>, %arg3: memref<1xi32, #tpu.memory_space<smem>>) -> (i32, i32) {
    %0 = arith.index_cast %arg0 : i32 to index
    %1 = memref.load %arg2[%0] : memref<1xi32, #tpu.memory_space<smem>>
    %c0_i32 = arith.constant 0 : i32
    %c0_i32_0 = arith.constant 0 : i32
    return %c0_i32, %1 : i32, i32
  }
}

</mosaic_0001>

<llo_original>
// kernel: _voxel_filter_core.1
$region0: #{_voxel_filter_core.1}
  #allocation0 [shape = 'u32[]', space=smem, size = 0x4, offset = 0x4, fixed_abs, tag = 'smem constant byte address 0x4 - core index']
  #allocation1 [shape = 'u32[144,128]{1,0:T(1,128)}', space=vmem, size = 0x12000, scoped, tag = 'internal scratch']
  #allocation2 [shape = 'f32[8,128]{1,0:T(8,128)}', space=vmem, size = 0x1000, scoped, tag = 'scratch operand']
  #allocation3 [shape = 's32[1]{0}', space=sflag, size = 0x4, scoped, tag = 'scoped memory for _voxel_filter_core.1']
  #allocation4 [shape = 's32[1]{0:T(128)S(6)}', space=smem, size = 0x200, scoped, tag = 'prefetched SMEM operand 0']
  #allocation5 [shape = 's32[1]{0:T(128)S(6)}', space=smem, size = 0x200, scoped, tag = 'prefetched SMEM operand 1']
  %s0 = inlined_call_operand.<no memory space> [shape: s32[1], index: 0, kind: input, shape index: {}]
  %s1 = inlined_call_operand.<no memory space> [shape: s32[1], index: 1, kind: input, shape index: {}]
  %s2 = inlined_call_operand.vmem [shape: s32[1,128], index: 2, kind: input, shape index: {}]
  %s3 = inlined_call_operand.vmem [shape: f32[8,128], index: 3, kind: input, shape index: {}]
  %s4 = inlined_call_operand.hbm [shape: f32[8,128], index: 4, kind: output, shape index: {}]
  %s5 = sld [smem:[#allocation0]]
  $region30: #{_voxel_filter_core.1} parent=0
    _
  %s7 = ssub.s32 1, %s5
  %s8 = scalar_select 0, %s7, %s5
  %9 = sst [smem:[#allocation4]] %s0
  %10 = sst [smem:[#allocation5]] %s1
  $region1: #{_voxel_filter_core.1} parent=0
    #allocation6 [shape = 'u8[4096]{0}', space=vmem, size = 0x1000, scoped, tag = 'output window, operand 0, single buffered']
    #allocation7 [shape = 's32[1]{0}', space=sflag, size = 0x4, scoped, tag = 'scoped memory for _voxel_filter_core.1']
    %11 = vsyncpa [#allocation7], 0
    // Predicated region
    $region2: #{_voxel_filter_core.1} parent=1 // pred_check
      _
    $region3: #{_voxel_filter_core.1} parent=1 // pred_check_branch
      %13 = sbr.rel (0) target = $region5
    $region4: #{_voxel_filter_core.1} parent=1 // pred_region
      %s14 = sld [smem:[#allocation4]]
      %s15 = smul.u32 %s14, 128
      %s16 = sld [smem:[#allocation5]]
      %p17 = scmp.lt.s32.totalorder %s15, %s16
      %s18 = scalar_select %p17, 0, 0
      %p19 = scmp.lt.s32.totalorder %s18, 0
      %s20 = scalar_select %p19, %s18, 0
      %s21 = scalar_lea.vmem %s2, %s20
      %s22 = sld [smem:[#allocation4]]
      %s23 = smul.u32 %s22, 128
      %s24 = sld [smem:[#allocation5]]
      %p25 = scmp.lt.s32.totalorder %s23, %s24
      %s26 = scalar_select %p25, 0, 0
    $region5: #{_voxel_filter_core.1} parent=1 // pred_fallthru
      _
    // Predicated region
    $region6: #{_voxel_filter_core.1} parent=1 // pred_check
      _
    $region7: #{_voxel_filter_core.1} parent=1 // pred_check_branch
      %28 = sbr.rel (0) target = $region9
    $region8: #{_voxel_filter_core.1} parent=1 // pred_region
      %s29 = sld [smem:[#allocation4]]
      %s30 = smul.u32 %s29, 128
      %s31 = sld [smem:[#allocation5]]
      %p32 = scmp.lt.s32.totalorder %s30, %s31
      %s33 = scalar_select %p32, 0, 0
      %p34 = scmp.lt.s32.totalorder %s33, 0
      %s35 = scalar_select %p34, %s33, 0
      %s36 = smul.addr %s35, 8
      %s37 = scalar_lea.vmem %s3, %s36
      %s38 = sld [smem:[#allocation4]]
      %s39 = smul.u32 %s38, 128
      %s40 = sld [smem:[#allocation5]]
      %p41 = scmp.lt.s32.totalorder %s39, %s40
      %s42 = scalar_select %p41, 0, 0
    $region9: #{_voxel_filter_core.1} parent=1 // pred_fallthru
      _
    %s43 = sld [smem:[#allocation4]]
    %s44 = smul.u32 %s43, 128
    %s45 = sld [smem:[#allocation5]]
    %p46 = scmp.lt.s32.totalorder %s44, %s45
    %s47 = scalar_select %p46, 0, 0
    %p48 = scmp.lt.s32.totalorder %s47, 0
    %s49 = scalar_select %p48, %s47, 0
    %s50 = scalar_lea.vmem %s2, %s49
    %s51 = sld [smem:[#allocation4]]
    %s52 = smul.u32 %s51, 128
    %s53 = sld [smem:[#allocation5]]
    %p54 = scmp.lt.s32.totalorder %s52, %s53
    %s55 = scalar_select %p54, 0, 0
    %p56 = scmp.lt.s32.totalorder %s55, 0
    %s57 = scalar_select %p56, %s55, 0
    %s58 = smul.addr %s57, 8
    %s59 = scalar_lea.vmem %s3, %s58
    %s60 = sld [smem:[#allocation4]]
    %s61 = smul.u32 %s60, 128
    %s62 = sld [smem:[#allocation5]]
    %p63 = scmp.lt.s32.totalorder %s61, %s62
    %s64 = scalar_select %p63, 0, 0
    %p65 = scmp.lt.s32.totalorder %s64, 0
    %s66 = scalar_select %p65, %s64, 0
    %s67 = scalar_lea.vmem %s2, %s66
    %s68 = sld [smem:[#allocation4]]
    %s69 = smul.u32 %s68, 128
    %s70 = sld [smem:[#allocation5]]
    %p71 = scmp.lt.s32.totalorder %s69, %s70
    %s72 = scalar_select %p71, 0, 0
    %s73 = sld [smem:[#allocation4]]
    %s74 = smul.u32 %s73, 128
    %s75 = sld [smem:[#allocation5]]
    %p76 = scmp.lt.s32.totalorder %s74, %s75
    %s77 = scalar_select %p76, 0, 0
    %p78 = scmp.lt.s32.totalorder %s77, 0
    %s79 = scalar_select %p78, %s77, 0
    %s80 = smul.addr %s79, 8
    %s81 = scalar_lea.vmem %s3, %s80
    %s82 = sld [smem:[#allocation4]]
    %s83 = smul.u32 %s82, 128
    %s84 = sld [smem:[#allocation5]]
    %p85 = scmp.lt.s32.totalorder %s83, %s84
    %s86 = scalar_select %p85, 0, 0
    %s87 = sld [smem:[#allocation4]]
    %s88 = sld [smem:[#allocation4]]
    %s89 = smul.u32 %s88, 128
    %p90 = scmp.eq.s32.totalorder 0, 0
    // Predicated region
    $region10: #{_voxel_filter_core.1} parent=1 // pred_check
      %p91 = pneg %p90
    $region11: #{_voxel_filter_core.1} parent=1 // pred_check_branch
      %93 = sbr.rel (%p91) target = $region13
    $region12: #{_voxel_filter_core.1} parent=1 // pred_region
      %94 = vst [vmem:[#allocation2] sm:$0xff] 0.0
    $region13: #{_voxel_filter_core.1} parent=1 // pred_fallthru
      _
    %s95 = sld [smem:[#allocation5]]
    %p96 = scmp.lt.s32.totalorder %s89, %s95
    // Predicated region
    $region14: #{_voxel_filter_core.1} parent=1 // pred_check
      %p97 = pneg %p96
    $region15: #{_voxel_filter_core.1} parent=1 // pred_check_branch
      %99 = sbr.rel (%p97) target = $region17
    $region16: #{_voxel_filter_core.1} parent=1 // pred_region
      %v100 = vld [vmem:[%s67] sm:$0x1]
      %v101 = vstv %s89
      %v102 = vsub.s32 %v100, %v101
      %v103 = vlaneseq
      %v104 = vshrl.u32 %v103, 7
      %v105 = vadd.s32 %v104, 8
      %v106 = vadd.s32 %v104, 16
      %v107 = vadd.s32 %v104, 24
      %v108 = vadd.s32 %v104, 32
      %v109 = vadd.s32 %v104, 40
      %v110 = vadd.s32 %v104, 48
      %v111 = vadd.s32 %v104, 56
      %v112 = vadd.s32 %v104, 64
      %v113 = vadd.s32 %v104, 72
      %v114 = vadd.s32 %v104, 80
      %v115 = vadd.s32 %v104, 88
      %v116 = vadd.s32 %v104, 96
      %v117 = vadd.s32 %v104, 104
      %v118 = vadd.s32 %v104, 112
      %v119 = vadd.s32 %v104, 120
      %v120 = vlaneseq
      %v121 = vshrl.u32 %v120, 7
      %v122 = vsub.s32 0, %v121
      %v123 = vrot.slane %v102, %v122
      %vm124 = vcmp.eq.s32.totalorder %v104, %v123
      %vm125 = vcmp.eq.s32.totalorder %v105, %v123
      %vm126 = vcmp.eq.s32.totalorder %v106, %v123
      %vm127 = vcmp.eq.s32.totalorder %v107, %v123
      %vm128 = vcmp.eq.s32.totalorder %v108, %v123
      %vm129 = vcmp.eq.s32.totalorder %v109, %v123
      %vm130 = vcmp.eq.s32.totalorder %v110, %v123
      %vm131 = vcmp.eq.s32.totalorder %v111, %v123
      %vm132 = vcmp.eq.s32.totalorder %v112, %v123
      %vm133 = vcmp.eq.s32.totalorder %v113, %v123
      %vm134 = vcmp.eq.s32.totalorder %v114, %v123
      %vm135 = vcmp.eq.s32.totalorder %v115, %v123
      %vm136 = vcmp.eq.s32.totalorder %v116, %v123
      %vm137 = vcmp.eq.s32.totalorder %v117, %v123
      %vm138 = vcmp.eq.s32.totalorder %v118, %v123
      %vm139 = vcmp.eq.s32.totalorder %v119, %v123
      %v140 = vsel %vm124, 1, 0
      %v141 = vsel %vm125, 1, 0
      %v142 = vsel %vm126, 1, 0
      %v143 = vsel %vm127, 1, 0
      %v144 = vsel %vm128, 1, 0
      %v145 = vsel %vm129, 1, 0
      %v146 = vsel %vm130, 1, 0
      %v147 = vsel %vm131, 1, 0
      %v148 = vsel %vm132, 1, 0
      %v149 = vsel %vm133, 1, 0
      %v150 = vsel %vm134, 1, 0
      %v151 = vsel %vm135, 1, 0
      %v152 = vsel %vm136, 1, 0
      %v153 = vsel %vm137, 1, 0
      %v154 = vsel %vm138, 1, 0
      %v155 = vsel %vm139, 1, 0
      %v156 = vcvt.s32.f32 %v140
      %v157 = vcvt.s32.f32 %v141
      %v158 = vcvt.s32.f32 %v142
      %v159 = vcvt.s32.f32 %v143
      %v160 = vcvt.s32.f32 %v144
      %v161 = vcvt.s32.f32 %v145
      %v162 = vcvt.s32.f32 %v146
      %v163 = vcvt.s32.f32 %v147
      %v164 = vcvt.s32.f32 %v148
      %v165 = vcvt.s32.f32 %v149
      %v166 = vcvt.s32.f32 %v150
      %v167 = vcvt.s32.f32 %v151
      %v168 = vcvt.s32.f32 %v152
      %v169 = vcvt.s32.f32 %v153
      %v170 = vcvt.s32.f32 %v154
      %v171 = vcvt.s32.f32 %v155
      %v172 = vld [vmem:[#allocation2] sm:$0xff]
      %v173 = vld [vmem:[%s81] sm:$0xff]
      %174 = vmatprep.subr.mxu0 0.0
      %175 = vmatpush1.xpose.msra.mxu0 %v156
      %176 = vmatprep.subr.mxu0 0.0
      %177 = vmatpush1.xpose.msra.mxu0 %v157
      %178 = vmatprep.subr.mxu0 0.0
      %179 = vmatpush1.xpose.msra.mxu0 %v158
      %180 = vmatprep.subr.mxu0 0.0
      %181 = vmatpush1.xpose.msra.mxu0 %v159
      %182 = vmatprep.subr.mxu0 0.0
      %183 = vmatpush1.xpose.msra.mxu0 %v160
      %184 = vmatprep.subr.mxu0 0.0
      %185 = vmatpush1.xpose.msra.mxu0 %v161
      %186 = vmatprep.subr.mxu0 0.0
      %187 = vmatpush1.xpose.msra.mxu0 %v162
      %188 = vmatprep.subr.mxu0 0.0
      %189 = vmatpush1.xpose.msra.mxu0 %v163
      %190 = vmatprep.subr.mxu0 0.0
      %191 = vmatpush1.xpose.msra.mxu0 %v164
      %192 = vmatprep.subr.mxu0 0.0
      %193 = vmatpush1.xpose.msra.mxu0 %v165
      %194 = vmatprep.subr.mxu0 0.0
      %195 = vmatpush1.xpose.msra.mxu0 %v166
      %196 = vmatprep.subr.mxu0 0.0
      %197 = vmatpush1.xpose.msra.mxu0 %v167
      %198 = vmatprep.subr.mxu0 0.0
      %199 = vmatpush1.xpose.msra.mxu0 %v168
      %200 = vmatprep.subr.mxu0 0.0
      %201 = vmatpush1.xpose.msra.mxu0 %v169
      %202 = vmatprep.subr.mxu0 0.0
      %203 = vmatpush1.xpose.msra.mxu0 %v170
      %204 = vmatprep.subr.mxu0 0.0
      %205 = vmatpush1.xpose.msra.mxu0 %v171
      %206 = vmatprep.subr.mxu0 0.0
      %207 = vmatpush1.xpose.msra.mxu0 0.0
      %208 = vmatprep.subr.mxu0 0.0
      %209 = vmatpush1.xpose.msra.mxu0 0.0
      %210 = vmatprep.subr.mxu0 0.0
      %211 = vmatpush1.xpose.msra.mxu0 0.0
      %212 = vmatprep.subr.mxu0 0.0
      %213 = vmatpush1.xpose.msra.mxu0 0.0
      %214 = vmatprep.subr.mxu0 0.0
      %215 = vmatpush1.xpose.msra.mxu0 0.0
      %216 = vmatprep.subr.mxu0 0.0
      %217 = vmatpush1.xpose.msra.mxu0 0.0
      %218 = vmatprep.subr.mxu0 0.0
      %219 = vmatpush1.xpose.msra.mxu0 0.0
      %220 = vmatprep.subr.mxu0 0.0
      %221 = vmatpush1.xpose.msra.mxu0 0.0
      %222 = vmatprep.subr.mxu0 0.0
      %223 = vmatpush1.xpose.msra.mxu0 0.0
      %224 = vmatprep.subr.mxu0 0.0
      %225 = vmatpush1.xpose.msra.mxu0 0.0
      %226 = vmatprep.subr.mxu0 0.0
      %227 = vmatpush1.xpose.msra.mxu0 0.0
      %228 = vmatprep.subr.mxu0 0.0
      %229 = vmatpush1.xpose.msra.mxu0 0.0
      %230 = vmatprep.subr.mxu0 0.0
      %231 = vmatpush1.xpose.msra.mxu0 0.0
      %232 = vmatprep.subr.mxu0 0.0
      %233 = vmatpush1.xpose.msra.mxu0 0.0
      %234 = vmatprep.subr.mxu0 0.0
      %235 = vmatpush1.xpose.msra.mxu0 0.0
      %236 = vmatprep.subr.mxu0 0.0
      %237 = vmatpush1.xpose.msra.mxu0 0.0
      %238 = vmatprep.mubr.f32.mxu0 0.0
      %239 = vmatmul.mubr.f32.gmra.mrb[0].mxu0 %v173
      %v240 = vpop.f32.mrb[0].mxu0
      %v241 = vadd.f32 0.0, %v240
      %v242 = vpop.f32.mrb[0].mxu0
      %243 = vdwg.mxu0
      %v244 = vadd.f32 %v172, %v241
      %245 = vst [vmem:[#allocation2] sm:$0xff] %v244
    $region17: #{_voxel_filter_core.1} parent=1 // pred_fallthru
      _
    // Predicated region
    $region18: #{_voxel_filter_core.1} parent=1 // pred_check
      %p246 = pneg %p90
    $region19: #{_voxel_filter_core.1} parent=1 // pred_check_branch
      %248 = sbr.rel (%p246) target = $region21
    $region20: #{_voxel_filter_core.1} parent=1 // pred_region
      %v249 = vld [vmem:[#allocation2] sm:$0xff]
      %v250 = vmax.f32 %v249, 1.0
      %v251 = vrcp.pop %v250
      %v252 = vmul.f32 %v250, %v251
      %v253 = vsub.f32 2.0, %v252
      %v254 = vmul.f32 %v251, %v253
      %v255 = vlaneseq
      %v256 = vshrl.u32 %v255, 7
      %vm257 = vcmp.lt.s32.totalorder %v256, 6
      %v258 = vlaneseq
      %v259 = vshrl.u32 %v258, 7
      %v260 = vsub.s32 6, %v259
      %v261 = vrot.slane %v254, %v260
      %v262 = vmul.f32 %v249, %v261
      %v263 = vsel %vm257, %v262, %v249
      %264 = vst [vmem:[#allocation6] sm:$0xff] %v263
    $region21: #{_voxel_filter_core.1} parent=1 // pred_fallthru
      _
    // Predicated region
    $region22: #{_voxel_filter_core.1} parent=1 // pred_check
      _
    $region23: #{_voxel_filter_core.1} parent=1 // pred_check_branch
      %266 = sbr.rel (0) target = $region25
    $region24: #{_voxel_filter_core.1} parent=1 // pred_region
      %s267 = sld [smem:[#allocation4]]
      %s269 = ssub.s32 128, 128
      %270 = vsyncadd [#allocation7], %s269
      %s271 = smul.addr %s267, 128
      %s272 = scalar_lea.hbm %s4, %s271
      %s274 = sshll.u32 [#allocation6], 4
      %s275 = int_to_ptr.vmem [resolvable:$true] %s274
      %277 = dma.vmem_to_hbm [thread:$0]  %s275, 128, %s272, [#allocation7]
    $region25: #{_voxel_filter_core.1} parent=1 // pred_fallthru
      _
    // Predicated region
    $region26: #{_voxel_filter_core.1} parent=1 // pred_check
      _
    $region27: #{_voxel_filter_core.1} parent=1 // pred_check_branch
      %279 = sbr.rel (0) target = $region29
    $region28: #{_voxel_filter_core.1} parent=1 // pred_region
      %280 = dma.done [#allocation7], 128
    $region29: #{_voxel_filter_core.1} parent=1 // pred_fallthru
      _
    %281 = vsyncpa [#allocation7], 1

</llo_original>
